<compile_context>
chip_gen: v7x
topology: tpu7x:2x2x1
jax: 0.10.0
libtpu: 0.0.40
codegen_flags: <defaults>
</compile_context>

<pallas_src>
import functools

import jax
import jax.numpy as jnp
from jax.experimental import pallas as pl
from jax.experimental.pallas import tpu as pltpu

G = 8  # number of groups, fixed in the PyTorch module

# TODO(synk): ss > 1 (AvgPool2d before the 1x1 convs) is not implemented; the
# module default ss=1 uses nn.Identity, which is what this kernel assumes.


def _invol_kernel(xu_ref, w_ref, b_ref, o_ref, ker_ref, *, kk, c, center):
    # xu_ref : (kk, C, TP)   unfolded taps, pixels lane-dense
    # w_ref  : (kk*C, C)     fused + expanded 1x1-conv weight (row = tap*C + ch)
    # b_ref  : (kk*C, 1)     fused + expanded bias
    # o_ref  : (C, TP)       output slab
    # ker_ref: (kk*C, TP)    VMEM scratch holding the generated involution kernel
    xf = xu_ref[center]                                      # (C, TP) == x itself
    ker_ref[...] = (
        jnp.dot(w_ref[...], xf, preferred_element_type=jnp.float32)
        + b_ref[...]
    )
    # Involution: weighted sum over the kk taps.  Every slice below is a
    # sublane-aligned (C, TP) block -> pure VPU FMAs, no relayout.
    acc = ker_ref[0:c, :] * xu_ref[0]
    for t in range(1, kk):
        acc = acc + ker_ref[t * c:(t + 1) * c, :] * xu_ref[t]
    o_ref[...] = acc.astype(o_ref.dtype)


def _pick_pixel_tile(n_pix, bytes_per_pix, vmem_budget=12 << 20):
    """Largest lane-tile (multiple of 128) dividing n_pix that fits the VMEM
    budget; prefers >= 2 grid steps so both v7x TensorCores get work."""
    cap = max(128, vmem_budget // max(bytes_per_pix, 1))
    divs = [t for t in range(128, min(n_pix, cap) + 1, 128) if n_pix % t == 0]
    if not divs:
        return n_pix                       # full extent is always a legal block
    two_step = [t for t in divs if n_pix // t >= 2]
    return (two_step or divs)[-1]


def invol_forward(x, w1, b1, w2, b2, *, k=3):
    """x: (B, C, H, W) NCHW float32.  Returns (B, C, H, W)."""
    b, c, h, w = x.shape
    assert c % G == 0, "C must be divisible by the group count G=8"
    pad = k // 2
    kk = k * k
    cg = c // G
    n_pix = b * h * w

    # ---- host glue: fuse the two 1x1 convs (no nonlinearity between them) ----
    #   ker = w2 @ (w1 @ x + b1) + b2 = (w2 @ w1) @ x + (w2 @ b1 + b2)
    w12 = w2 @ w1                                             # (kk*G, C)
    b12 = w2 @ b1 + b2                                        # (kk*G, 1)
    # Reorder rows (g, t) -> (t, g) and expand each group row to its C//G
    # channels, so kerf[t*C + ci] is the kernel value for (tap t, group ci//cg)
    # and the in-kernel tap loop is a pure sublane-aligned elementwise FMA.
    wf = jnp.repeat(w12.reshape(G, kk, c).transpose(1, 0, 2), cg, axis=1)
    bf = jnp.repeat(b12.reshape(G, kk, 1).transpose(1, 0, 2), cg, axis=1)
    wf = wf.reshape(kk * c, c)                                # (kk*C, C)
    bf = bf.reshape(kk * c, 1)                                # (kk*C, 1)

    # ---- host glue: unfold (zero pad + k*k shifts), lane-dense pixel axis ----
    xp = jnp.pad(x, ((0, 0), (0, 0), (pad, pad), (pad, pad)))
    taps = [xp[:, :, ti:ti + h, tj:tj + w]                    # (B, C, H, W) each
            for ti in range(k) for tj in range(k)]
    xu = jnp.stack(taps, axis=0)                              # (kk, B, C, H, W)
    xu = xu.transpose(0, 2, 1, 3, 4).reshape(kk, c, n_pix)    # (kk, C, B*H*W)

    # VMEM working set per tile pixel (f32): double-buffered taps + kernel
    # scratch + double-buffered output.
    bytes_per_pix = 4 * (2 * kk * c + kk * c + 2 * c)
    tp = _pick_pixel_tile(n_pix, bytes_per_pix)
    center = pad * k + pad                                    # tap index of x itself

    kernel = functools.partial(_invol_kernel, kk=kk, c=c, center=center)
    out_flat = pl.pallas_call(
        kernel,
        out_shape=jax.ShapeDtypeStruct((c, n_pix), x.dtype),
        grid_spec=pltpu.PrefetchScalarGridSpec(
            num_scalar_prefetch=0,
            grid=(n_pix // tp,),
            in_specs=[
                pl.BlockSpec((kk, c, tp), lambda i: (0, 0, i)),
                pl.BlockSpec((kk * c, c), lambda i: (0, 0)),   # VMEM-resident
                pl.BlockSpec((kk * c, 1), lambda i: (0, 0)),   # VMEM-resident
            ],
            out_specs=pl.BlockSpec((c, tp), lambda i: (0, i)),
            scratch_shapes=[pltpu.VMEM((kk * c, tp), jnp.float32)],
        ),
        compiler_params=pltpu.CompilerParams(
            dimension_semantics=("parallel",)),
    )(xu, wf, bf)

    # Layout plumbing back to NCHW (pixel index was batch-major: b*H*W + h*W + w).
    return out_flat.reshape(c, b, h, w).transpose(1, 0, 2, 3)


def invol_reference(x, w1, b1, w2, b2, *, k=3):
    """Pure-JAX reference matching the PyTorch forward (unfused convs)."""
    b, c, h, w = x.shape
    pad = k // 2
    xf = x.reshape(b, c, h * w)
    y1 = jnp.einsum('rc,bcp->brp', w1, xf) + b1[None]
    ker = jnp.einsum('oc,bcp->bop', w2, y1) + b2[None]
    ker = ker.reshape(b, G, k * k, h, w)
    xp = jnp.pad(x, ((0, 0), (0, 0), (pad, pad), (pad, pad)))
    out = jnp.zeros((b, G, c // G, h, w), jnp.float32)
    for p in range(k * k):
        ki, kj = p // k, p % k
        sh = xp[:, :, ki:ki + h, kj:kj + w].reshape(b, G, c // G, h, w)
        out = out + ker[:, :, p][:, :, None] * sh
    return out.reshape(b, c, h, w)


if __name__ == "__main__":
    # Shapes consistent with INVOL(c_in=16, k=3, r=2, ss=1); C must divide by G=8.
    b, c, h, w = 2, 16, 16, 16
    k, r = 3, 2
    cr = c // r
    kkg = k * k * G

    key = jax.random.PRNGKey(0)
    ks = jax.random.split(key, 5)
    x = jax.random.normal(ks[0], (b, c, h, w), jnp.float32)
    # Conv weights squeezed from (O, I, 1, 1) -> (O, I); biases as (O, 1).
    w1 = jax.random.normal(ks[1], (cr, c), jnp.float32) * 0.1     # conv_reduce weight
    b1 = jax.random.normal(ks[2], (cr, 1), jnp.float32) * 0.1     # conv_reduce bias
    w2 = jax.random.normal(ks[3], (kkg, cr), jnp.float32) * 0.1   # conv_span weight
    b2 = jax.random.normal(ks[4], (kkg, 1), jnp.float32) * 0.1    # conv_span bias

    out = invol_forward(x, w1, b1, w2, b2, k=k)
    out = jax.block_until_ready(out)

    ref = invol_reference(x, w1, b1, w2, b2, k=k)
    assert out.shape == (b, c, h, w)
    assert jnp.allclose(out, ref, atol=1e-4, rtol=1e-4), "mismatch vs reference"
    print("KERNEL_OK")
</pallas_src>

<mosaic_0001>
module attributes {stable_mosaic.version = 11 : i64} {
  func.func @_invol_kernel(%arg0: i32, %arg1: memref<9x16x256xf32, #tpu.memory_space<vmem>>, %arg2: memref<144x16xf32, #tpu.memory_space<vmem>>, %arg3: memref<144x1xf32, #tpu.memory_space<vmem>>, %arg4: memref<16x256xf32, #tpu.memory_space<vmem>>, %arg5: memref<144x256xf32, #tpu.memory_space<vmem>>) attributes {dimension_semantics = [#tpu.dimension_semantics<parallel>], iteration_bounds = array<i64: 2>, scalar_prefetch = 0 : i64, scratch_operands = 1 : i64, tpu.core_type = #tpu.core_type<tc>, window_params = [{transform_indices = @transform_0, window_bounds = array<i64: 9, 16, 256>}, {pipeline_mode = #tpu.pipeline_mode<synchronous>, transform_indices = @transform_1, window_bounds = array<i64: 144, 16>}, {pipeline_mode = #tpu.pipeline_mode<synchronous>, transform_indices = @transform_2, window_bounds = array<i64: 144, 1>}, {transform_indices = @transform_3, window_bounds = array<i64: 16, 256>}]} {
    %c4 = arith.constant 4 : index
    %c0 = arith.constant 0 : index
    %c0_0 = arith.constant 0 : index
    %0 = vector.load %arg1[%c4, %c0, %c0_0] : memref<9x16x256xf32, #tpu.memory_space<vmem>>, vector<1x16x256xf32>
    %1 = vector.shape_cast %0 : vector<1x16x256xf32> to vector<16x256xf32>
    %c0_1 = arith.constant 0 : index
    %c0_2 = arith.constant 0 : index
    %2 = vector.load %arg2[%c0_1, %c0_2] : memref<144x16xf32, #tpu.memory_space<vmem>>, vector<144x16xf32>
    %cst = arith.constant dense<0.000000e+00> : vector<144x256xf32>
    %3 = tpu.matmul %2, %1, %cst {dimension_numbers = #tpu.dot_dimension_numbers<[1], [0], [0], [1], [0, 0, 1, 1], [], []>} : vector<144x16xf32>, vector<16x256xf32>, vector<144x256xf32> -> vector<144x256xf32>
    %c0_3 = arith.constant 0 : index
    %c0_4 = arith.constant 0 : index
    %4 = vector.load %arg3[%c0_3, %c0_4] : memref<144x1xf32, #tpu.memory_space<vmem>>, vector<144x1xf32>
    %5 = vector.broadcast %4 : vector<144x1xf32> to vector<144x256xf32>
    %6 = arith.addf %3, %5 : vector<144x256xf32>
    %c0_5 = arith.constant 0 : index
    %c0_6 = arith.constant 0 : index
    %7 = vector.load %arg5[%c0_5, %c0_6] : memref<144x256xf32, #tpu.memory_space<vmem>>, vector<144x256xf32>
    tpu.vector_store %arg5[%c0_5, %c0_6], %6 {strides = array<i32>} : memref<144x256xf32, #tpu.memory_space<vmem>>, vector<144x256xf32>,
    %c0_7 = arith.constant 0 : index
    %c0_8 = arith.constant 0 : index
    %8 = vector.load %arg5[%c0_7, %c0_8] : memref<144x256xf32, #tpu.memory_space<vmem>>, vector<16x256xf32>
    %c0_9 = arith.constant 0 : index
    %c0_10 = arith.constant 0 : index
    %c0_11 = arith.constant 0 : index
    %9 = vector.load %arg1[%c0_9, %c0_10, %c0_11] : memref<9x16x256xf32, #tpu.memory_space<vmem>>, vector<1x16x256xf32>
    %10 = vector.shape_cast %9 : vector<1x16x256xf32> to vector<16x256xf32>
    %11 = arith.mulf %8, %10 : vector<16x256xf32>
    %c16 = arith.constant 16 : index
    %c0_12 = arith.constant 0 : index
    %12 = vector.load %arg5[%c16, %c0_12] : memref<144x256xf32, #tpu.memory_space<vmem>>, vector<16x256xf32>
    %c1 = arith.constant 1 : index
    %c0_13 = arith.constant 0 : index
    %c0_14 = arith.constant 0 : index
    %13 = vector.load %arg1[%c1, %c0_13, %c0_14] : memref<9x16x256xf32, #tpu.memory_space<vmem>>, vector<1x16x256xf32>
    %14 = vector.shape_cast %13 : vector<1x16x256xf32> to vector<16x256xf32>
    %15 = arith.mulf %12, %14 : vector<16x256xf32>
    %16 = arith.addf %11, %15 : vector<16x256xf32>
    %c32 = arith.constant 32 : index
    %c0_15 = arith.constant 0 : index
    %17 = vector.load %arg5[%c32, %c0_15] : memref<144x256xf32, #tpu.memory_space<vmem>>, vector<16x256xf32>
    %c2 = arith.constant 2 : index
    %c0_16 = arith.constant 0 : index
    %c0_17 = arith.constant 0 : index
    %18 = vector.load %arg1[%c2, %c0_16, %c0_17] : memref<9x16x256xf32, #tpu.memory_space<vmem>>, vector<1x16x256xf32>
    %19 = vector.shape_cast %18 : vector<1x16x256xf32> to vector<16x256xf32>
    %20 = arith.mulf %17, %19 : vector<16x256xf32>
    %21 = arith.addf %16, %20 : vector<16x256xf32>
    %c48 = arith.constant 48 : index
    %c0_18 = arith.constant 0 : index
    %22 = vector.load %arg5[%c48, %c0_18] : memref<144x256xf32, #tpu.memory_space<vmem>>, vector<16x256xf32>
    %c3 = arith.constant 3 : index
    %c0_19 = arith.constant 0 : index
    %c0_20 = arith.constant 0 : index
    %23 = vector.load %arg1[%c3, %c0_19, %c0_20] : memref<9x16x256xf32, #tpu.memory_space<vmem>>, vector<1x16x256xf32>
    %24 = vector.shape_cast %23 : vector<1x16x256xf32> to vector<16x256xf32>
    %25 = arith.mulf %22, %24 : vector<16x256xf32>
    %26 = arith.addf %21, %25 : vector<16x256xf32>
    %c64 = arith.constant 64 : index
    %c0_21 = arith.constant 0 : index
    %27 = vector.load %arg5[%c64, %c0_21] : memref<144x256xf32, #tpu.memory_space<vmem>>, vector<16x256xf32>
    %c4_22 = arith.constant 4 : index
    %c0_23 = arith.constant 0 : index
    %c0_24 = arith.constant 0 : index
    %28 = vector.load %arg1[%c4_22, %c0_23, %c0_24] : memref<9x16x256xf32, #tpu.memory_space<vmem>>, vector<1x16x256xf32>
    %29 = vector.shape_cast %28 : vector<1x16x256xf32> to vector<16x256xf32>
    %30 = arith.mulf %27, %29 : vector<16x256xf32>
    %31 = arith.addf %26, %30 : vector<16x256xf32>
    %c80 = arith.constant 80 : index
    %c0_25 = arith.constant 0 : index
    %32 = vector.load %arg5[%c80, %c0_25] : memref<144x256xf32, #tpu.memory_space<vmem>>, vector<16x256xf32>
    %c5 = arith.constant 5 : index
    %c0_26 = arith.constant 0 : index
    %c0_27 = arith.constant 0 : index
    %33 = vector.load %arg1[%c5, %c0_26, %c0_27] : memref<9x16x256xf32, #tpu.memory_space<vmem>>, vector<1x16x256xf32>
    %34 = vector.shape_cast %33 : vector<1x16x256xf32> to vector<16x256xf32>
    %35 = arith.mulf %32, %34 : vector<16x256xf32>
    %36 = arith.addf %31, %35 : vector<16x256xf32>
    %c96 = arith.constant 96 : index
    %c0_28 = arith.constant 0 : index
    %37 = vector.load %arg5[%c96, %c0_28] : memref<144x256xf32, #tpu.memory_space<vmem>>, vector<16x256xf32>
    %c6 = arith.constant 6 : index
    %c0_29 = arith.constant 0 : index
    %c0_30 = arith.constant 0 : index
    %38 = vector.load %arg1[%c6, %c0_29, %c0_30] : memref<9x16x256xf32, #tpu.memory_space<vmem>>, vector<1x16x256xf32>
    %39 = vector.shape_cast %38 : vector<1x16x256xf32> to vector<16x256xf32>
    %40 = arith.mulf %37, %39 : vector<16x256xf32>
    %41 = arith.addf %36, %40 : vector<16x256xf32>
    %c112 = arith.constant 112 : index
    %c0_31 = arith.constant 0 : index
    %42 = vector.load %arg5[%c112, %c0_31] : memref<144x256xf32, #tpu.memory_space<vmem>>, vector<16x256xf32>
    %c7 = arith.constant 7 : index
    %c0_32 = arith.constant 0 : index
    %c0_33 = arith.constant 0 : index
    %43 = vector.load %arg1[%c7, %c0_32, %c0_33] : memref<9x16x256xf32, #tpu.memory_space<vmem>>, vector<1x16x256xf32>
    %44 = vector.shape_cast %43 : vector<1x16x256xf32> to vector<16x256xf32>
    %45 = arith.mulf %42, %44 : vector<16x256xf32>
    %46 = arith.addf %41, %45 : vector<16x256xf32>
    %c128 = arith.constant 128 : index
    %c0_34 = arith.constant 0 : index
    %47 = vector.load %arg5[%c128, %c0_34] : memref<144x256xf32, #tpu.memory_space<vmem>>, vector<16x256xf32>
    %c8 = arith.constant 8 : index
    %c0_35 = arith.constant 0 : index
    %c0_36 = arith.constant 0 : index
    %48 = vector.load %arg1[%c8, %c0_35, %c0_36] : memref<9x16x256xf32, #tpu.memory_space<vmem>>, vector<1x16x256xf32>
    %49 = vector.shape_cast %48 : vector<1x16x256xf32> to vector<16x256xf32>
    %50 = arith.mulf %47, %49 : vector<16x256xf32>
    %51 = arith.addf %46, %50 : vector<16x256xf32>
    %c0_37 = arith.constant 0 : index
    %c0_38 = arith.constant 0 : index
    %52 = vector.load %arg4[%c0_37, %c0_38] : memref<16x256xf32, #tpu.memory_space<vmem>>, vector<16x256xf32>
    tpu.vector_store %arg4[%c0_37, %c0_38], %51 {strides = array<i32>} : memref<16x256xf32, #tpu.memory_space<vmem>>, vector<16x256xf32>,
    return
  }
  func.func @transform_0(%arg0: i32) -> (i32, i32, i32) {
    %c0_i32 = arith.constant 0 : i32
    %c0_i32_0 = arith.constant 0 : i32
    %c0_i32_1 = arith.constant 0 : i32
    return %c0_i32, %c0_i32_0, %arg0 : i32, i32, i32
  }
  func.func @transform_1(%arg0: i32) -> (i32, i32) {
    %c0_i32 = arith.constant 0 : i32
    %c0_i32_0 = arith.constant 0 : i32
    %c0_i32_1 = arith.constant 0 : i32
    return %c0_i32, %c0_i32_0 : i32, i32
  }
  func.func @transform_2(%arg0: i32) -> (i32, i32) {
    %c0_i32 = arith.constant 0 : i32
    %c0_i32_0 = arith.constant 0 : i32
    %c0_i32_1 = arith.constant 0 : i32
    return %c0_i32, %c0_i32_0 : i32, i32
  }
  func.func @transform_3(%arg0: i32) -> (i32, i32) {
    %c0_i32 = arith.constant 0 : i32
    %c0_i32_0 = arith.constant 0 : i32
    return %c0_i32, %arg0 : i32, i32
  }
}

</mosaic_0001>

<llo_original>
// kernel: tpu_custom_call.1
$region0: #{tpu_custom_call.1}
  #allocation0 [shape = 'u32[]', space=smem, size = 0x4, offset = 0x4, fixed_abs, tag = 'smem constant byte address 0x4 - core index']
  #allocation1 [shape = 'u32[144,128]{1,0:T(1,128)}', space=vmem, size = 0x12000, scoped, tag = 'internal scratch']
  #allocation2 [shape = 'f32[144,256]{1,0:T(8,128)}', space=vmem, size = 0x24000, scoped, tag = 'scratch operand']
  %s0 = inlined_call_operand.hbm [shape: f32[9,16,512], index: 0, kind: input, shape index: {}]
  %s1 = inlined_call_operand.vmem [shape: f32[144,16], index: 1, kind: input, shape index: {}]
  %s2 = inlined_call_operand.vmem [shape: f32[144,1], index: 2, kind: input, shape index: {}]
  %s3 = inlined_call_operand.hbm [shape: f32[16,512], index: 3, kind: output, shape index: {}]
  %s4 = sld [smem:[#allocation0]]
  $region49: #{tpu_custom_call.1} parent=0
    _
  %s6 = ssub.s32 1, %s4
  %s7 = scalar_select 0, %s6, %s4
  $region1: #{tpu_custom_call.1} parent=0
    #allocation3 [shape = 'u8[294912]{0}', space=vmem, size = 0x48000, scoped, tag = 'input window, operand 0']
    #allocation4 [shape = 's32[2]{0}', space=sflag, size = 0x8, scoped, tag = 'scoped memory for tpu_custom_call.1']
    #allocation5 [shape = 's32[2]{0}', space=sflag, size = 0x8, scoped, tag = 'scoped memory for tpu_custom_call.1']
    #allocation6 [shape = 'u8[32768]{0}', space=vmem, size = 0x8000, scoped, tag = 'output window, operand 0']
    %8 = vsyncpa [#allocation4], 0
    %s9 = scalar_lea.sflag [#allocation4], 1
    %10 = vsyncpa %s9, 0
    %11 = vsyncpa [#allocation5], 0
    %s12 = scalar_lea.sflag [#allocation5], 1
    %13 = vsyncpa %s12, 0
    loop: start=0, step=1, limit=4
    $region2: #{tpu_custom_call.1} parent=1 // loop_pre_header
      _
    $region3: #{tpu_custom_call.1} parent=1 // loop_header
      %s15 = sphi 0, %s19
      %p16 = scmp.ge.s32.totalorder %s15, 4
      %s25 = sphi 0, %s27
      %s28 = sphi 0, %s25
      %s29 = sphi 0, %s28
      %s45 = sphi 0, %s29
      %s49 = sphi 0, %s49
      %s51 = sphi 0, %s49
      %s52 = sphi 0, %s51
      %s66 = sphi 0, %s52
      %s70 = sphi 0, %s70
      %s72 = sphi 0, %s70
      %s73 = sphi 0, %s72
      %s87 = sphi 0, %s73
      %s93 = sphi 0, %s95
      %s96 = sphi 0, %s93
      %s97 = sphi 0, %s96
      %s113 = sphi 0, %s97
    $region4: #{tpu_custom_call.1} parent=1 // loop_header_branch
      %18 = sbr.rel (%p16) target = $region8
    $region5: #{tpu_custom_call.1} parent=1 // loop_body
      %s20 = ssub.s32 %s15, 1
      %s21 = ssub.s32 %s15, 2
      %s22 = sadd.s32 %s15, 1
      %s23 = ssub.s32 %s15, %s22
      %p24 = scmp.eq.s32.totalorder %s23, 0
      %s26 = sadd.s32 %s25, 1
      %s27 = scalar_select %p24, %s25, %s26
      %p30 = pneg %p24
      %p31 = scmp.eq.s32.totalorder %s15, 1
      %p32 = por %p30, %p31
      %p33 = scmp.ne.s32.totalorder %s25, %s28
      %p34 = scmp.eq.s32.totalorder %s15, 0
      %p35 = por %p33, %p34
      %p36 = scmp.ne.s32.totalorder %s25, %s28
      %p37 = scmp.eq.s32.totalorder %s20, 1
      %p38 = por %p36, %p37
      %p39 = scmp.ne.s32.totalorder %s28, %s29
      %p40 = scmp.eq.s32.totalorder %s20, 0
      %p41 = por %p39, %p40
      %p42 = scmp.ne.s32.totalorder %s28, %s29
      %p43 = scmp.eq.s32.totalorder %s21, 1
      %p44 = por %p42, %p43
      %p46 = scmp.ne.s32.totalorder %s29, %s45
      %p47 = scmp.eq.s32.totalorder %s21, 0
      %p48 = por %p46, %p47
      %s50 = sadd.s32 %s49, 1
      %p53 = scmp.eq.s32.totalorder %s15, 1
      %p54 = scmp.ne.s32.totalorder %s49, %s51
      %p55 = scmp.eq.s32.totalorder %s15, 0
      %p56 = por %p54, %p55
      %p57 = scmp.ne.s32.totalorder %s49, %s51
      %p58 = scmp.eq.s32.totalorder %s20, 1
      %p59 = por %p57, %p58
      %p60 = scmp.ne.s32.totalorder %s51, %s52
      %p61 = scmp.eq.s32.totalorder %s20, 0
      %p62 = por %p60, %p61
      %p63 = scmp.ne.s32.totalorder %s51, %s52
      %p64 = scmp.eq.s32.totalorder %s21, 1
      %p65 = por %p63, %p64
      %p67 = scmp.ne.s32.totalorder %s52, %s66
      %p68 = scmp.eq.s32.totalorder %s21, 0
      %p69 = por %p67, %p68
      %s71 = sadd.s32 %s70, 1
      %p74 = scmp.eq.s32.totalorder %s15, 1
      %p75 = scmp.ne.s32.totalorder %s70, %s72
      %p76 = scmp.eq.s32.totalorder %s15, 0
      %p77 = por %p75, %p76
      %p78 = scmp.ne.s32.totalorder %s70, %s72
      %p79 = scmp.eq.s32.totalorder %s20, 1
      %p80 = por %p78, %p79
      %p81 = scmp.ne.s32.totalorder %s72, %s73
      %p82 = scmp.eq.s32.totalorder %s20, 0
      %p83 = por %p81, %p82
      %p84 = scmp.ne.s32.totalorder %s72, %s73
      %p85 = scmp.eq.s32.totalorder %s21, 1
      %p86 = por %p84, %p85
      %p88 = scmp.ne.s32.totalorder %s73, %s87
      %p89 = scmp.eq.s32.totalorder %s21, 0
      %p90 = por %p88, %p89
      %s91 = ssub.s32 %s15, %s22
      %p92 = scmp.eq.s32.totalorder %s91, 0
      %s94 = sadd.s32 %s93, 1
      %s95 = scalar_select %p92, %s93, %s94
      %p98 = pneg %p92
      %p99 = scmp.eq.s32.totalorder %s15, 1
      %p100 = por %p98, %p99
      %p101 = scmp.ne.s32.totalorder %s93, %s96
      %p102 = scmp.eq.s32.totalorder %s15, 0
      %p103 = por %p101, %p102
      %p104 = scmp.ne.s32.totalorder %s93, %s96
      %p105 = scmp.eq.s32.totalorder %s20, 1
      %p106 = por %p104, %p105
      %p107 = scmp.ne.s32.totalorder %s96, %s97
      %p108 = scmp.eq.s32.totalorder %s20, 0
      %p109 = por %p107, %p108
      %p110 = scmp.ne.s32.totalorder %s96, %s97
      %p111 = scmp.eq.s32.totalorder %s21, 1
      %p112 = por %p110, %p111
      %p114 = scmp.ne.s32.totalorder %s97, %s113
      %p115 = scmp.eq.s32.totalorder %s21, 0
      %p116 = por %p114, %p115
      %p117 = scmp.le.s32.totalorder 1, %s15
      %p118 = scmp.lt.s32.totalorder %s15, 3
      %p119 = pnand %p117, %p118
      %p120 = pneg %p119
      // Predicated region
      $region9: #{tpu_custom_call.1} parent=5 // pred_check
        _
      $region10: #{tpu_custom_call.1} parent=5 // pred_check_branch
        %122 = sbr.rel (%p119) target = $region12
      $region11: #{tpu_custom_call.1} parent=5 // pred_region
        %s123 = ssub.s32 %s15, 1
        // Predicated region
        $region13: #{tpu_custom_call.1} parent=11 // pred_check
          %p124 = pneg %p62
        $region14: #{tpu_custom_call.1} parent=11 // pred_check_branch
          %126 = sbr.rel (%p124) target = $region16
        $region15: #{tpu_custom_call.1} parent=11 // pred_region
          _
        $region16: #{tpu_custom_call.1} parent=11 // pred_fallthru
          _
        // Predicated region
        $region17: #{tpu_custom_call.1} parent=11 // pred_check
          %p127 = pneg %p83
        $region18: #{tpu_custom_call.1} parent=11 // pred_check_branch
          %129 = sbr.rel (%p127) target = $region20
        $region19: #{tpu_custom_call.1} parent=11 // pred_region
          _
        $region20: #{tpu_custom_call.1} parent=11 // pred_fallthru
          _
      $region12: #{tpu_custom_call.1} parent=5 // pred_fallthru
        _
      %p130 = scmp.lt.s32.totalorder %s15, 2
      // Predicated region
      $region21: #{tpu_custom_call.1} parent=5 // pred_check
        %p131 = pneg %p130
      $region22: #{tpu_custom_call.1} parent=5 // pred_check_branch
        %133 = sbr.rel (%p131) target = $region24
      $region23: #{tpu_custom_call.1} parent=5 // pred_region
        // Predicated region
        $region25: #{tpu_custom_call.1} parent=23 // pred_check
          %p134 = pneg %p35
        $region26: #{tpu_custom_call.1} parent=23 // pred_check_branch
          %136 = sbr.rel (%p134) target = $region28
        $region27: #{tpu_custom_call.1} parent=23 // pred_region
          %s137 = sand.u32 %s25, 1
          %s138 = scalar_lea.sflag [#allocation4], %s137
          %s139 = sand.u32 %s25, 1
          %s140 = smul.addr %s139, 288
          %s141 = scalar_lea.vmem [#allocation3], %s140
          %s142 = smul.u32 2, %s15
          %s144 = ssub.s32 4608, 4608
          %145 = vsyncadd %s138, %s144
          %s146 = smul.addr %s142, 128
          %s147 = scalar_lea.hbm %s0, %s146
          %s148 = sshll.u32 %s141, 4
          %s149 = int_to_ptr.vmem [resolvable:$true] %s148
          %154 = dma.hbm_to_vmem [thread:$0]  %s147, 4608, %s149, %s138, 512, 256, 16
        $region28: #{tpu_custom_call.1} parent=23 // pred_fallthru
          _
      $region24: #{tpu_custom_call.1} parent=5 // pred_fallthru
        _
      %p155 = scmp.le.s32.totalorder 1, %s15
      %p156 = scmp.lt.s32.totalorder %s15, 3
      %p157 = pnand %p155, %p156
      %p158 = pneg %p157
      // Predicated region
      $region29: #{tpu_custom_call.1} parent=5 // pred_check
        _
      $region30: #{tpu_custom_call.1} parent=5 // pred_check_branch
        %160 = sbr.rel (%p157) target = $region32
      $region31: #{tpu_custom_call.1} parent=5 // pred_region
        %s161 = ssub.s32 %s15, 1
        %s162 = sand.u32 %s28, 1
        %s163 = scalar_lea.sflag [#allocation4], %s162
        %s164 = sand.u32 %s28, 1
        %s165 = smul.addr %s164, 288
        %s166 = scalar_lea.vmem [#allocation3], %s165
        // Predicated region
        $region33: #{tpu_custom_call.1} parent=31 // pred_check
          %p167 = pneg %p41
        $region34: #{tpu_custom_call.1} parent=31 // pred_check_branch
          %169 = sbr.rel (%p167) target = $region36
        $region35: #{tpu_custom_call.1} parent=31 // pred_region
          %170 = dma.done %s163, 4608
        $region36: #{tpu_custom_call.1} parent=31 // pred_fallthru
          _
        %s171 = sand.u32 %s28, 1
        %s172 = scalar_lea.sflag [#allocation4], %s171
        %s173 = sand.u32 %s28, 1
        %s174 = smul.addr %s173, 288
        %s175 = scalar_lea.vmem [#allocation3], %s174
        %p176 = pneg %p41
        %p177 = pneg %p38
        %p178 = pneg %p62
        %p179 = pneg %p59
        %p180 = pneg %p83
        %p181 = pneg %p80
        %p182 = pneg %p109
        %p183 = pneg %p106
        %s184 = sand.u32 %s96, 1
        %s185 = scalar_lea.sflag [#allocation5], %s184
        %s186 = sand.u32 %s96, 1
        %s187 = smul.addr %s186, 32
        %s188 = scalar_lea.vmem [#allocation6], %s187
        %s189 = smul.u32 2, %s20
        %s190 = smul.u32 2, %s20
        %s191 = scalar_lea.vmem %s166, 128 [#allocation3]
        %v192 = vld [vmem:[%s191] sm:$0xff]
        %v193 = vld [vmem:[%s191 + $0x8] sm:$0xff]
        %v194 = vld [vmem:[%s191 + $0x10] sm:$0xff]
        %v195 = vld [vmem:[%s191 + $0x18] sm:$0xff]
        %v196 = vld [vmem:[%s1] sm:$0xff]
        %v197 = vld [vmem:[%s1 + $0x8] sm:$0xff]
        %v198 = vld [vmem:[%s1 + $0x10] sm:$0xff]
        %v199 = vld [vmem:[%s1 + $0x18] sm:$0xff]
        %v200 = vld [vmem:[%s1 + $0x20] sm:$0xff]
        %v201 = vld [vmem:[%s1 + $0x28] sm:$0xff]
        %v202 = vld [vmem:[%s1 + $0x30] sm:$0xff]
        %v203 = vld [vmem:[%s1 + $0x38] sm:$0xff]
        %v204 = vld [vmem:[%s1 + $0x40] sm:$0xff]
        %v205 = vld [vmem:[%s1 + $0x48] sm:$0xff]
        %v206 = vld [vmem:[%s1 + $0x50] sm:$0xff]
        %v207 = vld [vmem:[%s1 + $0x58] sm:$0xff]
        %v208 = vld [vmem:[%s1 + $0x60] sm:$0xff]
        %v209 = vld [vmem:[%s1 + $0x68] sm:$0xff]
        %v210 = vld [vmem:[%s1 + $0x70] sm:$0xff]
        %v211 = vld [vmem:[%s1 + $0x78] sm:$0xff]
        %v212 = vld [vmem:[%s1 + $0x80] sm:$0xff]
        %v213 = vld [vmem:[%s1 + $0x88] sm:$0xff]
        %v214 = vld [vmem:[%s2] sm:$0xff]
        %v215 = vld [vmem:[%s2 + $0x8] sm:$0xff]
        %v216 = vld [vmem:[%s2 + $0x10] sm:$0xff]
        %v217 = vld [vmem:[%s2 + $0x18] sm:$0xff]
        %v218 = vld [vmem:[%s2 + $0x20] sm:$0xff]
        %v219 = vld [vmem:[%s2 + $0x28] sm:$0xff]
        %v220 = vld [vmem:[%s2 + $0x30] sm:$0xff]
        %v221 = vld [vmem:[%s2 + $0x38] sm:$0xff]
        %v222 = vld [vmem:[%s2 + $0x40] sm:$0xff]
        %v223 = vld [vmem:[%s2 + $0x48] sm:$0xff]
        %v224 = vld [vmem:[%s2 + $0x50] sm:$0xff]
        %v225 = vld [vmem:[%s2 + $0x58] sm:$0xff]
        %v226 = vld [vmem:[%s2 + $0x60] sm:$0xff]
        %v227 = vld [vmem:[%s2 + $0x68] sm:$0xff]
        %v228 = vld [vmem:[%s2 + $0x70] sm:$0xff]
        %v229 = vld [vmem:[%s2 + $0x78] sm:$0xff]
        %v230 = vld [vmem:[%s2 + $0x80] sm:$0xff]
        %v231 = vld [vmem:[%s2 + $0x88] sm:$0xff]
        %233 = vset.pattern.permute.xlu0 0
        %234 = vperm.xlu0 %233, %v214
        %v235 = vpop.permute.xlu0 %234
        %238 = vset.pattern.permute.xlu0 0
        %239 = vperm.xlu0 %238, %v215
        %v240 = vpop.permute.xlu0 %239
        %243 = vset.pattern.permute.xlu0 0
        %244 = vperm.xlu0 %243, %v216
        %v245 = vpop.permute.xlu0 %244
        %248 = vset.pattern.permute.xlu0 0
        %249 = vperm.xlu0 %248, %v217
        %v250 = vpop.permute.xlu0 %249
        %253 = vset.pattern.permute.xlu0 0
        %254 = vperm.xlu0 %253, %v218
        %v255 = vpop.permute.xlu0 %254
        %258 = vset.pattern.permute.xlu0 0
        %259 = vperm.xlu0 %258, %v219
        %v260 = vpop.permute.xlu0 %259
        %263 = vset.pattern.permute.xlu0 0
        %264 = vperm.xlu0 %263, %v220
        %v265 = vpop.permute.xlu0 %264
        %268 = vset.pattern.permute.xlu0 0
        %269 = vperm.xlu0 %268, %v221
        %v270 = vpop.permute.xlu0 %269
        %273 = vset.pattern.permute.xlu0 0
        %274 = vperm.xlu0 %273, %v222
        %v275 = vpop.permute.xlu0 %274
        %278 = vset.pattern.permute.xlu0 0
        %279 = vperm.xlu0 %278, %v223
        %v280 = vpop.permute.xlu0 %279
        %283 = vset.pattern.permute.xlu0 0
        %284 = vperm.xlu0 %283, %v224
        %v285 = vpop.permute.xlu0 %284
        %288 = vset.pattern.permute.xlu0 0
        %289 = vperm.xlu0 %288, %v225
        %v290 = vpop.permute.xlu0 %289
        %293 = vset.pattern.permute.xlu0 0
        %294 = vperm.xlu0 %293, %v226
        %v295 = vpop.permute.xlu0 %294
        %298 = vset.pattern.permute.xlu0 0
        %299 = vperm.xlu0 %298, %v227
        %v300 = vpop.permute.xlu0 %299
        %303 = vset.pattern.permute.xlu0 0
        %304 = vperm.xlu0 %303, %v228
        %v305 = vpop.permute.xlu0 %304
        %308 = vset.pattern.permute.xlu0 0
        %309 = vperm.xlu0 %308, %v229
        %v310 = vpop.permute.xlu0 %309
        %313 = vset.pattern.permute.xlu0 0
        %314 = vperm.xlu0 %313, %v230
        %v315 = vpop.permute.xlu0 %314
        %318 = vset.pattern.permute.xlu0 0
        %319 = vperm.xlu0 %318, %v231
        %v320 = vpop.permute.xlu0 %319
        %vm322 = vcmask 130048
        %v324 = vsel %vm322, %v196, 0
        %v327 = vsel %vm322, %v197, 0
        %v330 = vsel %vm322, %v198, 0
        %v333 = vsel %vm322, %v199, 0
        %v336 = vsel %vm322, %v200, 0
        %v339 = vsel %vm322, %v201, 0
        %v342 = vsel %vm322, %v202, 0
        %v345 = vsel %vm322, %v203, 0
        %v348 = vsel %vm322, %v204, 0
        %v351 = vsel %vm322, %v205, 0
        %v354 = vsel %vm322, %v206, 0
        %v357 = vsel %vm322, %v207, 0
        %v360 = vsel %vm322, %v208, 0
        %v363 = vsel %vm322, %v209, 0
        %v366 = vsel %vm322, %v210, 0
        %v369 = vsel %vm322, %v211, 0
        %v372 = vsel %vm322, %v212, 0
        %v375 = vsel %vm322, %v213, 0
        %377 = vmatprep.subr.mxu0 %v193
        %378 = vmatpush1.msra.mxu0 %v192
        %379 = vmatprep.subr.mxu0 %v195
        %380 = vmatpush1.msra.mxu0 %v194
        %381 = vmatprep.subr.mxu0 0.0
        %382 = vmatpush1.msra.mxu0 0.0
        %383 = vmatprep.subr.mxu0 0.0
        %384 = vmatpush1.msra.mxu0 0.0
        %385 = vmatprep.subr.mxu0 0.0
        %386 = vmatpush1.msra.mxu0 0.0
        %387 = vmatprep.subr.mxu0 0.0
        %388 = vmatpush1.msra.mxu0 0.0
        %389 = vmatprep.subr.mxu0 0.0
        %390 = vmatpush1.msra.mxu0 0.0
        %391 = vmatprep.subr.mxu0 0.0
        %392 = vmatpush1.msra.mxu0 0.0
        %393 = vmatprep.subr.mxu0 0.0
        %394 = vmatpush1.msra.mxu0 0.0
        %395 = vmatprep.subr.mxu0 0.0
        %396 = vmatpush1.msra.mxu0 0.0
        %397 = vmatprep.subr.mxu0 0.0
        %398 = vmatpush1.msra.mxu0 0.0
        %399 = vmatprep.subr.mxu0 0.0
        %400 = vmatpush1.msra.mxu0 0.0
        %401 = vmatprep.subr.mxu0 0.0
        %402 = vmatpush1.msra.mxu0 0.0
        %403 = vmatprep.subr.mxu0 0.0
        %404 = vmatpush1.msra.mxu0 0.0
        %405 = vmatprep.subr.mxu0 0.0
        %406 = vmatpush1.msra.mxu0 0.0
        %407 = vmatprep.subr.mxu0 0.0
        %408 = vmatpush1.msra.mxu0 0.0
        %409 = vmatprep.subr.mxu0 0.0
        %410 = vmatpush1.msra.mxu0 0.0
        %411 = vmatprep.subr.mxu0 0.0
        %412 = vmatpush1.msra.mxu0 0.0
        %413 = vmatprep.subr.mxu0 0.0
        %414 = vmatpush1.msra.mxu0 0.0
        %415 = vmatprep.subr.mxu0 0.0
        %416 = vmatpush1.msra.mxu0 0.0
        %417 = vmatprep.subr.mxu0 0.0
        %418 = vmatpush1.msra.mxu0 0.0
        %419 = vmatprep.subr.mxu0 0.0
        %420 = vmatpush1.msra.mxu0 0.0
        %421 = vmatprep.subr.mxu0 0.0
        %422 = vmatpush1.msra.mxu0 0.0
        %423 = vmatprep.subr.mxu0 0.0
        %424 = vmatpush1.msra.mxu0 0.0
        %425 = vmatprep.subr.mxu0 0.0
        %426 = vmatpush1.msra.mxu0 0.0
        %427 = vmatprep.subr.mxu0 0.0
        %428 = vmatpush1.msra.mxu0 0.0
        %429 = vmatprep.subr.mxu0 0.0
        %430 = vmatpush1.msra.mxu0 0.0
        %431 = vmatprep.subr.mxu0 0.0
        %432 = vmatpush1.msra.mxu0 0.0
        %433 = vmatprep.subr.mxu0 0.0
        %434 = vmatpush1.msra.mxu0 0.0
        %435 = vmatprep.subr.mxu0 0.0
        %436 = vmatpush1.msra.mxu0 0.0
        %437 = vmatprep.subr.mxu0 0.0
        %438 = vmatpush1.msra.mxu0 0.0
        %439 = vmatprep.subr.mxu0 0.0
        %440 = vmatpush1.msra.mxu0 0.0
        %441 = vmatprep.mubr.f32.mxu0 0.0
        %442 = vmatmul.mubr.f32.gmra.mrb[0].mxu0 %v324
        %v443 = vpop.f32.mrb[0].mxu0
        %v444 = vadd.f32 %v235, %v443
        %v445 = vpop.f32.mrb[0].mxu0
        %v446 = vadd.f32 %v235, %v445
        %447 = vmatprep.mubr.f32.mxu0 0.0
        %448 = vmatmul.mubr.f32.gmra.mrb[0].mxu0 %v327
        %v449 = vpop.f32.mrb[0].mxu0
        %v450 = vadd.f32 %v240, %v449
        %v451 = vpop.f32.mrb[0].mxu0
        %v452 = vadd.f32 %v240, %v451
        %453 = vmatprep.mubr.f32.mxu0 0.0
        %454 = vmatmul.mubr.f32.gmra.mrb[0].mxu0 %v330
        %v455 = vpop.f32.mrb[0].mxu0
        %v456 = vadd.f32 %v245, %v455
        %v457 = vpop.f32.mrb[0].mxu0
        %v458 = vadd.f32 %v245, %v457
        %459 = vmatprep.mubr.f32.mxu0 0.0
        %460 = vmatmul.mubr.f32.gmra.mrb[0].mxu0 %v333
        %v461 = vpop.f32.mrb[0].mxu0
        %v462 = vadd.f32 %v250, %v461
        %v463 = vpop.f32.mrb[0].mxu0
        %v464 = vadd.f32 %v250, %v463
        %465 = vmatprep.mubr.f32.mxu0 0.0
        %466 = vmatmul.mubr.f32.gmra.mrb[0].mxu0 %v336
        %v467 = vpop.f32.mrb[0].mxu0
        %v468 = vadd.f32 %v255, %v467
        %v469 = vpop.f32.mrb[0].mxu0
        %v470 = vadd.f32 %v255, %v469
        %471 = vmatprep.mubr.f32.mxu0 0.0
        %472 = vmatmul.mubr.f32.gmra.mrb[0].mxu0 %v339
        %v473 = vpop.f32.mrb[0].mxu0
        %v474 = vadd.f32 %v260, %v473
        %v475 = vpop.f32.mrb[0].mxu0
        %v476 = vadd.f32 %v260, %v475
        %477 = vmatprep.mubr.f32.mxu0 0.0
        %478 = vmatmul.mubr.f32.gmra.mrb[0].mxu0 %v342
        %v479 = vpop.f32.mrb[0].mxu0
        %v480 = vadd.f32 %v265, %v479
        %v481 = vpop.f32.mrb[0].mxu0
        %v482 = vadd.f32 %v265, %v481
        %483 = vmatprep.mubr.f32.mxu0 0.0
        %484 = vmatmul.mubr.f32.gmra.mrb[0].mxu0 %v345
        %v485 = vpop.f32.mrb[0].mxu0
        %v486 = vadd.f32 %v270, %v485
        %v487 = vpop.f32.mrb[0].mxu0
        %v488 = vadd.f32 %v270, %v487
        %489 = vmatprep.mubr.f32.mxu0 0.0
        %490 = vmatmul.mubr.f32.gmra.mrb[0].mxu0 %v348
        %v491 = vpop.f32.mrb[0].mxu0
        %v492 = vadd.f32 %v275, %v491
        %v493 = vpop.f32.mrb[0].mxu0
        %v494 = vadd.f32 %v275, %v493
        %495 = vmatprep.mubr.f32.mxu0 0.0
        %496 = vmatmul.mubr.f32.gmra.mrb[0].mxu0 %v351
        %v497 = vpop.f32.mrb[0].mxu0
        %v498 = vadd.f32 %v280, %v497
        %v499 = vpop.f32.mrb[0].mxu0
        %v500 = vadd.f32 %v280, %v499
        %501 = vmatprep.mubr.f32.mxu0 0.0
        %502 = vmatmul.mubr.f32.gmra.mrb[0].mxu0 %v354
        %v503 = vpop.f32.mrb[0].mxu0
        %v504 = vadd.f32 %v285, %v503
        %v505 = vpop.f32.mrb[0].mxu0
        %v506 = vadd.f32 %v285, %v505
        %507 = vmatprep.mubr.f32.mxu0 0.0
        %508 = vmatmul.mubr.f32.gmra.mrb[0].mxu0 %v357
        %v509 = vpop.f32.mrb[0].mxu0
        %v510 = vadd.f32 %v290, %v509
        %v511 = vpop.f32.mrb[0].mxu0
        %v512 = vadd.f32 %v290, %v511
        %513 = vmatprep.mubr.f32.mxu0 0.0
        %514 = vmatmul.mubr.f32.gmra.mrb[0].mxu0 %v360
        %v515 = vpop.f32.mrb[0].mxu0
        %v516 = vadd.f32 %v295, %v515
        %v517 = vpop.f32.mrb[0].mxu0
        %v518 = vadd.f32 %v295, %v517
        %519 = vmatprep.mubr.f32.mxu0 0.0
        %520 = vmatmul.mubr.f32.gmra.mrb[0].mxu0 %v363
        %v521 = vpop.f32.mrb[0].mxu0
        %v522 = vadd.f32 %v300, %v521
        %v523 = vpop.f32.mrb[0].mxu0
        %v524 = vadd.f32 %v300, %v523
        %525 = vmatprep.mubr.f32.mxu0 0.0
        %526 = vmatmul.mubr.f32.gmra.mrb[0].mxu0 %v366
        %v527 = vpop.f32.mrb[0].mxu0
        %v528 = vadd.f32 %v305, %v527
        %v529 = vpop.f32.mrb[0].mxu0
        %v530 = vadd.f32 %v305, %v529
        %531 = vmatprep.mubr.f32.mxu0 0.0
        %532 = vmatmul.mubr.f32.gmra.mrb[0].mxu0 %v369
        %v533 = vpop.f32.mrb[0].mxu0
        %v534 = vadd.f32 %v310, %v533
        %v535 = vpop.f32.mrb[0].mxu0
        %v536 = vadd.f32 %v310, %v535
        %537 = vmatprep.mubr.f32.mxu0 0.0
        %538 = vmatmul.mubr.f32.gmra.mrb[0].mxu0 %v372
        %v539 = vpop.f32.mrb[0].mxu0
        %v540 = vadd.f32 %v315, %v539
        %v541 = vpop.f32.mrb[0].mxu0
        %v542 = vadd.f32 %v315, %v541
        %543 = vmatprep.mubr.f32.mxu0 0.0
        %544 = vmatmul.mubr.f32.gmra.mrb[0].mxu0 %v375
        %v545 = vpop.f32.mrb[0].mxu0
        %v546 = vadd.f32 %v320, %v545
        %v547 = vpop.f32.mrb[0].mxu0
        %v548 = vadd.f32 %v320, %v547
        %549 = vdwg.mxu0
        %550 = vst [vmem:[#allocation2] sm:$0xff] %v444
        %551 = vst [vmem:[#allocation2 + $0x8] sm:$0xff] %v446
        %552 = vst [vmem:[#allocation2 + $0x10] sm:$0xff] %v450
        %553 = vst [vmem:[#allocation2 + $0x18] sm:$0xff] %v452
        %554 = vst [vmem:[#allocation2 + $0x20] sm:$0xff] %v456
        %555 = vst [vmem:[#allocation2 + $0x28] sm:$0xff] %v458
        %556 = vst [vmem:[#allocation2 + $0x30] sm:$0xff] %v462
        %557 = vst [vmem:[#allocation2 + $0x38] sm:$0xff] %v464
        %558 = vst [vmem:[#allocation2 + $0x40] sm:$0xff] %v468
        %559 = vst [vmem:[#allocation2 + $0x48] sm:$0xff] %v470
        %560 = vst [vmem:[#allocation2 + $0x50] sm:$0xff] %v474
        %561 = vst [vmem:[#allocation2 + $0x58] sm:$0xff] %v476
        %562 = vst [vmem:[#allocation2 + $0x60] sm:$0xff] %v480
        %563 = vst [vmem:[#allocation2 + $0x68] sm:$0xff] %v482
        %564 = vst [vmem:[#allocation2 + $0x70] sm:$0xff] %v486
        %565 = vst [vmem:[#allocation2 + $0x78] sm:$0xff] %v488
        %566 = vst [vmem:[#allocation2 + $0x80] sm:$0xff] %v492
        %567 = vst [vmem:[#allocation2 + $0x88] sm:$0xff] %v494
        %568 = vst [vmem:[#allocation2 + $0x90] sm:$0xff] %v498
        %569 = vst [vmem:[#allocation2 + $0x98] sm:$0xff] %v500
        %570 = vst [vmem:[#allocation2 + $0xa0] sm:$0xff] %v504
        %571 = vst [vmem:[#allocation2 + $0xa8] sm:$0xff] %v506
        %572 = vst [vmem:[#allocation2 + $0xb0] sm:$0xff] %v510
        %573 = vst [vmem:[#allocation2 + $0xb8] sm:$0xff] %v512
        %574 = vst [vmem:[#allocation2 + $0xc0] sm:$0xff] %v516
        %575 = vst [vmem:[#allocation2 + $0xc8] sm:$0xff] %v518
        %576 = vst [vmem:[#allocation2 + $0xd0] sm:$0xff] %v522
        %577 = vst [vmem:[#allocation2 + $0xd8] sm:$0xff] %v524
        %578 = vst [vmem:[#allocation2 + $0xe0] sm:$0xff] %v528
        %579 = vst [vmem:[#allocation2 + $0xe8] sm:$0xff] %v530
        %580 = vst [vmem:[#allocation2 + $0xf0] sm:$0xff] %v534
        %581 = vst [vmem:[#allocation2 + $0xf8] sm:$0xff] %v536
        %582 = vst [vmem:[#allocation2 + $0x100] sm:$0xff] %v540
        %583 = vst [vmem:[#allocation2 + $0x108] sm:$0xff] %v542
        %584 = vst [vmem:[#allocation2 + $0x110] sm:$0xff] %v546
        %585 = vst [vmem:[#allocation2 + $0x118] sm:$0xff] %v548
        %v586 = vld [vmem:[#allocation2] sm:$0xff]
        %v587 = vld [vmem:[#allocation2 + $0x8] sm:$0xff]
        %v588 = vld [vmem:[#allocation2 + $0x10] sm:$0xff]
        %v589 = vld [vmem:[#allocation2 + $0x18] sm:$0xff]
        %v590 = vld [vmem:[%s166] sm:$0xff]
        %v591 = vld [vmem:[%s166 + $0x8] sm:$0xff]
        %v592 = vld [vmem:[%s166 + $0x10] sm:$0xff]
        %v593 = vld [vmem:[%s166 + $0x18] sm:$0xff]
        %v594 = vmul.f32 %v586, %v590
        %v595 = vmul.f32 %v587, %v591
        %v596 = vmul.f32 %v588, %v592
        %v597 = vmul.f32 %v589, %v593
        %v598 = vld [vmem:[#allocation2 + $0x20] sm:$0xff]
        %v599 = vld [vmem:[#allocation2 + $0x28] sm:$0xff]
        %v600 = vld [vmem:[#allocation2 + $0x30] sm:$0xff]
        %v601 = vld [vmem:[#allocation2 + $0x38] sm:$0xff]
        %s602 = scalar_lea.vmem %s166, 32 [#allocation3]
        %v603 = vld [vmem:[%s602] sm:$0xff]
        %v604 = vld [vmem:[%s602 + $0x8] sm:$0xff]
        %v605 = vld [vmem:[%s602 + $0x10] sm:$0xff]
        %v606 = vld [vmem:[%s602 + $0x18] sm:$0xff]
        %v607 = vmul.f32 %v598, %v603
        %v608 = vmul.f32 %v599, %v604
        %v609 = vmul.f32 %v600, %v605
        %v610 = vmul.f32 %v601, %v606
        %v611 = vadd.f32 %v594, %v607
        %v612 = vadd.f32 %v595, %v608
        %v613 = vadd.f32 %v596, %v609
        %v614 = vadd.f32 %v597, %v610
        %v615 = vld [vmem:[#allocation2 + $0x40] sm:$0xff]
        %v616 = vld [vmem:[#allocation2 + $0x48] sm:$0xff]
        %v617 = vld [vmem:[#allocation2 + $0x50] sm:$0xff]
        %v618 = vld [vmem:[#allocation2 + $0x58] sm:$0xff]
        %s619 = scalar_lea.vmem %s166, 64 [#allocation3]
        %v620 = vld [vmem:[%s619] sm:$0xff]
        %v621 = vld [vmem:[%s619 + $0x8] sm:$0xff]
        %v622 = vld [vmem:[%s619 + $0x10] sm:$0xff]
        %v623 = vld [vmem:[%s619 + $0x18] sm:$0xff]
        %v624 = vmul.f32 %v615, %v620
        %v625 = vmul.f32 %v616, %v621
        %v626 = vmul.f32 %v617, %v622
        %v627 = vmul.f32 %v618, %v623
        %v628 = vadd.f32 %v611, %v624
        %v629 = vadd.f32 %v612, %v625
        %v630 = vadd.f32 %v613, %v626
        %v631 = vadd.f32 %v614, %v627
        %v632 = vld [vmem:[#allocation2 + $0x60] sm:$0xff]
        %v633 = vld [vmem:[#allocation2 + $0x68] sm:$0xff]
        %v634 = vld [vmem:[#allocation2 + $0x70] sm:$0xff]
        %v635 = vld [vmem:[#allocation2 + $0x78] sm:$0xff]
        %s636 = scalar_lea.vmem %s166, 96 [#allocation3]
        %v637 = vld [vmem:[%s636] sm:$0xff]
        %v638 = vld [vmem:[%s636 + $0x8] sm:$0xff]
        %v639 = vld [vmem:[%s636 + $0x10] sm:$0xff]
        %v640 = vld [vmem:[%s636 + $0x18] sm:$0xff]
        %v641 = vmul.f32 %v632, %v637
        %v642 = vmul.f32 %v633, %v638
        %v643 = vmul.f32 %v634, %v639
        %v644 = vmul.f32 %v635, %v640
        %v645 = vadd.f32 %v628, %v641
        %v646 = vadd.f32 %v629, %v642
        %v647 = vadd.f32 %v630, %v643
        %v648 = vadd.f32 %v631, %v644
        %v649 = vld [vmem:[#allocation2 + $0x80] sm:$0xff]
        %v650 = vld [vmem:[#allocation2 + $0x88] sm:$0xff]
        %v651 = vld [vmem:[#allocation2 + $0x90] sm:$0xff]
        %v652 = vld [vmem:[#allocation2 + $0x98] sm:$0xff]
        %v653 = vld [vmem:[%s191] sm:$0xff]
        %v654 = vld [vmem:[%s191 + $0x8] sm:$0xff]
        %v655 = vld [vmem:[%s191 + $0x10] sm:$0xff]
        %v656 = vld [vmem:[%s191 + $0x18] sm:$0xff]
        %v657 = vmul.f32 %v649, %v653
        %v658 = vmul.f32 %v650, %v654
        %v659 = vmul.f32 %v651, %v655
        %v660 = vmul.f32 %v652, %v656
        %v661 = vadd.f32 %v645, %v657
        %v662 = vadd.f32 %v646, %v658
        %v663 = vadd.f32 %v647, %v659
        %v664 = vadd.f32 %v648, %v660
        %v665 = vld [vmem:[#allocation2 + $0xa0] sm:$0xff]
        %v666 = vld [vmem:[#allocation2 + $0xa8] sm:$0xff]
        %v667 = vld [vmem:[#allocation2 + $0xb0] sm:$0xff]
        %v668 = vld [vmem:[#allocation2 + $0xb8] sm:$0xff]
        %s669 = scalar_lea.vmem %s166, 160 [#allocation3]
        %v670 = vld [vmem:[%s669] sm:$0xff]
        %v671 = vld [vmem:[%s669 + $0x8] sm:$0xff]
        %v672 = vld [vmem:[%s669 + $0x10] sm:$0xff]
        %v673 = vld [vmem:[%s669 + $0x18] sm:$0xff]
        %v674 = vmul.f32 %v665, %v670
        %v675 = vmul.f32 %v666, %v671
        %v676 = vmul.f32 %v667, %v672
        %v677 = vmul.f32 %v668, %v673
        %v678 = vadd.f32 %v661, %v674
        %v679 = vadd.f32 %v662, %v675
        %v680 = vadd.f32 %v663, %v676
        %v681 = vadd.f32 %v664, %v677
        %v682 = vld [vmem:[#allocation2 + $0xc0] sm:$0xff]
        %v683 = vld [vmem:[#allocation2 + $0xc8] sm:$0xff]
        %v684 = vld [vmem:[#allocation2 + $0xd0] sm:$0xff]
        %v685 = vld [vmem:[#allocation2 + $0xd8] sm:$0xff]
        %s686 = scalar_lea.vmem %s166, 192 [#allocation3]
        %v687 = vld [vmem:[%s686] sm:$0xff]
        %v688 = vld [vmem:[%s686 + $0x8] sm:$0xff]
        %v689 = vld [vmem:[%s686 + $0x10] sm:$0xff]
        %v690 = vld [vmem:[%s686 + $0x18] sm:$0xff]
        %v691 = vmul.f32 %v682, %v687
        %v692 = vmul.f32 %v683, %v688
        %v693 = vmul.f32 %v684, %v689
        %v694 = vmul.f32 %v685, %v690
        %v695 = vadd.f32 %v678, %v691
        %v696 = vadd.f32 %v679, %v692
        %v697 = vadd.f32 %v680, %v693
        %v698 = vadd.f32 %v681, %v694
        %v699 = vld [vmem:[#allocation2 + $0xe0] sm:$0xff]
        %v700 = vld [vmem:[#allocation2 + $0xe8] sm:$0xff]
        %v701 = vld [vmem:[#allocation2 + $0xf0] sm:$0xff]
        %v702 = vld [vmem:[#allocation2 + $0xf8] sm:$0xff]
        %s703 = scalar_lea.vmem %s166, 224 [#allocation3]
        %v704 = vld [vmem:[%s703] sm:$0xff]
        %v705 = vld [vmem:[%s703 + $0x8] sm:$0xff]
        %v706 = vld [vmem:[%s703 + $0x10] sm:$0xff]
        %v707 = vld [vmem:[%s703 + $0x18] sm:$0xff]
        %v708 = vmul.f32 %v699, %v704
        %v709 = vmul.f32 %v700, %v705
        %v710 = vmul.f32 %v701, %v706
        %v711 = vmul.f32 %v702, %v707
        %v712 = vadd.f32 %v695, %v708
        %v713 = vadd.f32 %v696, %v709
        %v714 = vadd.f32 %v697, %v710
        %v715 = vadd.f32 %v698, %v711
        %v716 = vld [vmem:[#allocation2 + $0x100] sm:$0xff]
        %v717 = vld [vmem:[#allocation2 + $0x108] sm:$0xff]
        %v718 = vld [vmem:[#allocation2 + $0x110] sm:$0xff]
        %v719 = vld [vmem:[#allocation2 + $0x118] sm:$0xff]
        %s720 = scalar_lea.vmem %s166, 256 [#allocation3]
        %v721 = vld [vmem:[%s720] sm:$0xff]
        %v722 = vld [vmem:[%s720 + $0x8] sm:$0xff]
        %v723 = vld [vmem:[%s720 + $0x10] sm:$0xff]
        %v724 = vld [vmem:[%s720 + $0x18] sm:$0xff]
        %v725 = vmul.f32 %v716, %v721
        %v726 = vmul.f32 %v717, %v722
        %v727 = vmul.f32 %v718, %v723
        %v728 = vmul.f32 %v719, %v724
        %v729 = vadd.f32 %v712, %v725
        %v730 = vadd.f32 %v713, %v726
        %v731 = vadd.f32 %v714, %v727
        %v732 = vadd.f32 %v715, %v728
        %733 = vst [vmem:[%s188] sm:$0xff] %v729
        %734 = vst [vmem:[%s188 + $0x8] sm:$0xff] %v730
        %735 = vst [vmem:[%s188 + $0x10] sm:$0xff] %v731
        %736 = vst [vmem:[%s188 + $0x18] sm:$0xff] %v732
        %s737 = sand.u32 %s96, 1
        %s738 = scalar_lea.sflag [#allocation5], %s737
        %s739 = sand.u32 %s96, 1
        %s740 = smul.addr %s739, 32
        %s741 = scalar_lea.vmem [#allocation6], %s740
        // Predicated region
        $region37: #{tpu_custom_call.1} parent=31 // pred_check
          %p742 = pneg %p106
        $region38: #{tpu_custom_call.1} parent=31 // pred_check_branch
          %744 = sbr.rel (%p742) target = $region40
        $region39: #{tpu_custom_call.1} parent=31 // pred_region
          %s745 = smul.u32 2, %s20
          %s747 = ssub.s32 512, 512
          %748 = vsyncadd %s738, %s747
          %s749 = smul.addr %s745, 128
          %s750 = scalar_lea.hbm %s3, %s749
          %s751 = sshll.u32 %s741, 4
          %s752 = int_to_ptr.vmem [resolvable:$true] %s751
          %757 = dma.vmem_to_hbm [thread:$0]  %s752, 512, %s750, %s738, 256, 512, 16
        $region40: #{tpu_custom_call.1} parent=31 // pred_fallthru
          _
      $region32: #{tpu_custom_call.1} parent=5 // pred_fallthru
        _
      %p758 = scmp.le.s32.totalorder 2, %s15
      // Predicated region
      $region41: #{tpu_custom_call.1} parent=5 // pred_check
        %p759 = pneg %p758
      $region42: #{tpu_custom_call.1} parent=5 // pred_check_branch
        %761 = sbr.rel (%p759) target = $region44
      $region43: #{tpu_custom_call.1} parent=5 // pred_region
        %s762 = ssub.s32 %s15, 2
        // Predicated region
        $region45: #{tpu_custom_call.1} parent=43 // pred_check
          %p763 = pneg %p112
        $region46: #{tpu_custom_call.1} parent=43 // pred_check_branch
          %765 = sbr.rel (%p763) target = $region48
        $region47: #{tpu_custom_call.1} parent=43 // pred_region
          %s766 = sand.u32 %s97, 1
          %s767 = scalar_lea.sflag [#allocation5], %s766
          %s768 = sand.u32 %s97, 1
          %s769 = smul.addr %s768, 32
          %s770 = scalar_lea.vmem [#allocation6], %s769
          %771 = dma.done %s767, 512
        $region48: #{tpu_custom_call.1} parent=43 // pred_fallthru
          _
      $region44: #{tpu_custom_call.1} parent=5 // pred_fallthru
        _
    $region6: #{tpu_custom_call.1} parent=1 // loop_footer
      %s19 = sadd.s32 1, %s15
    $region7: #{tpu_custom_call.1} parent=1 // loop_footer_branch
      %14 = sbr.rel target = $region3
    $region8: #{tpu_custom_call.1} parent=1 // loop_exit
      _
    %772 = vsyncpa [#allocation4], 1
    %s773 = scalar_lea.sflag [#allocation4], 1
    %774 = vsyncpa %s773, 1
    %775 = vsyncpa [#allocation5], 1
    %s776 = scalar_lea.sflag [#allocation5], 1
    %777 = vsyncpa %s776, 1

</llo_original>
